<compile_context>
chip_gen: v5e
topology: v5e:2x2
jax: 0.10.0
libtpu: 0.0.40
codegen_flags: <defaults>
</compile_context>

<pallas_src>
import math

import jax
import jax.numpy as jnp
from jax.experimental import pallas as pl
from jax.experimental.pallas import tpu as pltpu

H1 = 700
H1_PAD = 768      # fc1 width 700 -> 768 (multiple of 128); zero-pad is a no-op through ReLU+matmul
H2 = 128          # fc2 width (already lane-aligned)

_VMEM_BUDGET = 36 << 20       # target working set; keeps headroom under v7x's 64 MiB physical VMEM
_VMEM_LIMIT_FLOOR = 32 << 20  # lift v5e's 16 MiB default scoped limit
_VMEM_LIMIT_CAP = 56 << 20    # never request more scoped VMEM than fits v7x physical VMEM


def _round_up(n, m):
    return ((n + m - 1) // m) * m


def _cdiv(a, b):
    return -(-a // b)


def _mlp_kernel(x_ref, w1_ref, b1_ref, w2_ref, b2_ref, w3_ref, b3_ref, o_ref):
    # fc1/fc2 on the MXU (bf16 in, f32 accum); fc3 on the VPU/XLU; sigmoid on the EUP.
    x = x_ref[...].astype(jnp.bfloat16)                                # in-kernel f32 -> bf16 cast
    h1 = jnp.dot(x, w1_ref[...], preferred_element_type=jnp.float32) + b1_ref[...]
    h1 = jnp.maximum(h1, 0.0).astype(jnp.bfloat16)                     # ReLU
    h2 = jnp.dot(h1, w2_ref[...], preferred_element_type=jnp.float32) + b2_ref[...]
    h2 = jnp.maximum(h2, 0.0)                                          # ReLU, keep f32 for VPU fc3
    # fc3: w3 is effectively a length-128 vector -> broadcast-multiply + lane reduction.
    logits = jnp.sum(h2 * w3_ref[...], axis=-1, keepdims=True) + b3_ref[...]
    o_ref[...] = jax.nn.sigmoid(logits).astype(o_ref.dtype)            # sigmoid


def init_params(key, in_features, hidden1=H1, hidden2=H2, out_features=1):
    """Deterministic init mimicking torch.nn.Linear's U(-1/sqrt(fan_in), 1/sqrt(fan_in))."""
    keys = jax.random.split(key, 6)

    def linear(kw, kb, fan_in, fan_out):
        bound = 1.0 / math.sqrt(fan_in)
        w = jax.random.uniform(kw, (fan_in, fan_out), jnp.float32, -bound, bound)
        b = jax.random.uniform(kb, (1, fan_out), jnp.float32, -bound, bound)
        return w, b

    w1, b1 = linear(keys[0], keys[1], in_features, hidden1)
    w2, b2 = linear(keys[2], keys[3], hidden1, hidden2)
    w3, b3 = linear(keys[4], keys[5], hidden2, out_features)
    return {"w1": w1, "b1": b1, "w2": w2, "b2": b2, "w3": w3, "b3": b3}


def pack_params(params):
    """Zero-pad to lane-aligned shapes; bf16 MXU weights, f32 biases, fc3 as an f32 row vector."""
    w1, b1 = params["w1"], params["b1"]
    w2, b2 = params["w2"], params["b2"]
    h1 = w1.shape[1]
    w1p = jnp.pad(w1, ((0, 0), (0, H1_PAD - h1))).astype(jnp.bfloat16)
    b1p = jnp.pad(b1, ((0, 0), (0, H1_PAD - h1))).astype(jnp.float32)
    w2p = jnp.pad(w2, ((0, H1_PAD - h1), (0, 0))).astype(jnp.bfloat16)
    b2p = b2.astype(jnp.float32)
    w3r = params["w3"].T.astype(jnp.float32)        # (1, 128) row vector for the VPU fc3
    b3p = params["b3"].astype(jnp.float32)          # (1, 1) scalar
    return {"w1": w1p, "b1": b1p, "w2": w2p, "b2": b2p, "w3": w3r, "b3": b3p}


def _vmem_bytes(tb, d):
    weights = (d * H1_PAD + H1_PAD * H2) * 2        # bf16 weights, single-buffered
    vectors = (H1_PAD + H2 + H2 + 1) * 4            # biases + fc3 row, f32
    x_tiles = 2 * tb * d * 4                        # double-buffered f32 input tile
    o_tiles = 2 * tb * 4                            # double-buffered (tb, 1) f32 output tile
    acts = tb * (H1_PAD * 6 + H2 * 6 + H2 * 4)      # h1/h2 f32+bf16 temporaries (with margin)
    return weights + vectors + x_tiles + o_tiles + acts


def _choose_batch_tile(batch, d, block_b):
    n_steps = _cdiv(batch, block_b)
    if batch > 128 and n_steps == 1:
        n_steps = 2                                 # >=2 grid steps so both v7x TensorCores work
    tb = min(block_b, _round_up(_cdiv(batch, n_steps), 16))
    tb = max(tb, 16)
    while tb > 16 and _vmem_bytes(tb, d) > _VMEM_BUDGET:
        tb = _round_up(tb // 2, 16)                 # shrink only for very large in_features
    return tb


def fully_connected_nn_forward(x, packed, *, block_b=512):
    """x: (B, H, W) float32.  packed: output of pack_params().  Returns (B, 1) float32."""
    B = x.shape[0]
    x_flat = x.reshape(B, -1)                       # torch .view(B, -1); stays f32 (cast in-kernel)
    D = x_flat.shape[1]
    w1, b1 = packed["w1"], packed["b1"]
    w2, b2 = packed["w2"], packed["b2"]
    w3, b3 = packed["w3"], packed["b3"]

    tb = _choose_batch_tile(B, D, block_b)
    b_pad = _round_up(B, tb)
    if b_pad != B:
        x_flat = jnp.pad(x_flat, ((0, b_pad - B), (0, 0)))

    vmem_limit = int(min(max(_vmem_bytes(tb, D) * 3 // 2, _VMEM_LIMIT_FLOOR), _VMEM_LIMIT_CAP))

    # Weights/biases: constant block index -> VMEM-resident across the grid; single-buffered
    # because the block never changes (second pipeline buffer would be pure VMEM waste).
    def resident(shape):
        return pl.BlockSpec(shape, lambda i: (0,) * len(shape),
                            pipeline_mode=pl.Buffered(1))

    out = pl.pallas_call(
        _mlp_kernel,
        out_shape=jax.ShapeDtypeStruct((b_pad, 1), jnp.float32),
        grid=(b_pad // tb,),
        in_specs=[
            pl.BlockSpec((tb, D), lambda i: (i, 0)),    # x: tiled over batch
            resident(w1.shape), resident(b1.shape),
            resident(w2.shape), resident(b2.shape),
            resident(w3.shape), resident(b3.shape),
        ],
        out_specs=pl.BlockSpec((tb, 1), lambda i: (i, 0)),
        compiler_params=pltpu.CompilerParams(
            dimension_semantics=("parallel",),
            vmem_limit_bytes=vmem_limit),
    )(x_flat, w1, b1, w2, b2, w3, b3)

    return out[:B]                                   # drop batch padding -> (B, 1)


if __name__ == "__main__":
    key = jax.random.PRNGKey(0)
    k_x, k_p = jax.random.split(key)

    # Small shapes consistent with the module: FullyConnectedNN(height=16, width=16), batch=2.
    B, H, W = 2, 16, 16
    x = jax.random.normal(k_x, (B, H, W), dtype=jnp.float32)
    params = init_params(k_p, in_features=H * W)
    packed = pack_params(params)

    out = fully_connected_nn_forward(x, packed)
    out = jax.block_until_ready(out)
    assert out.shape == (B, 1)

    # Reference 1 (tight): identical bf16-weight math in pure JAX.
    xf = x.reshape(B, -1).astype(jnp.bfloat16)
    h1 = jnp.maximum(jnp.dot(xf, packed["w1"], preferred_element_type=jnp.float32)
                     + packed["b1"], 0.0).astype(jnp.bfloat16)
    h2 = jnp.maximum(jnp.dot(h1, packed["w2"], preferred_element_type=jnp.float32)
                     + packed["b2"], 0.0)
    ref_bf16 = jax.nn.sigmoid(jnp.sum(h2 * packed["w3"], axis=-1, keepdims=True) + packed["b3"])
    assert jnp.allclose(out, ref_bf16, atol=1e-4, rtol=1e-4)

    # Reference 2 (loose): original full-f32 PyTorch-equivalent math (bf16 quantization slack).
    xf32 = x.reshape(B, -1)
    h1 = jnp.maximum(xf32 @ params["w1"] + params["b1"], 0.0)
    h2 = jnp.maximum(h1 @ params["w2"] + params["b2"], 0.0)
    ref_f32 = jax.nn.sigmoid(h2 @ params["w3"] + params["b3"])
    assert jnp.allclose(out, ref_f32, atol=2e-2, rtol=2e-2)

    print("KERNEL_OK")
</pallas_src>

<mosaic_0001>
module attributes {stable_mosaic.version = 11 : i64} {
  func.func @_mlp_kernel(%arg0: i32, %arg1: memref<16x256xf32, #tpu.memory_space<vmem>>, %arg2: memref<256x768xbf16, #tpu.memory_space<vmem>>, %arg3: memref<1x768xf32, #tpu.memory_space<vmem>>, %arg4: memref<768x128xbf16, #tpu.memory_space<vmem>>, %arg5: memref<1x128xf32, #tpu.memory_space<vmem>>, %arg6: memref<1x128xf32, #tpu.memory_space<vmem>>, %arg7: memref<1x1xf32, #tpu.memory_space<vmem>>, %arg8: memref<16x1xf32, #tpu.memory_space<vmem>>) attributes {dimension_semantics = [#tpu.dimension_semantics<parallel>], iteration_bounds = array<i64: 1>, scalar_prefetch = 0 : i64, scratch_operands = 0 : i64, tpu.core_type = #tpu.core_type<tc>, window_params = [{transform_indices = @transform_0, window_bounds = array<i64: 16, 256>}, {pipeline_mode = #tpu.pipeline_mode<synchronous>, transform_indices = @transform_1, window_bounds = array<i64: 256, 768>}, {pipeline_mode = #tpu.pipeline_mode<synchronous>, transform_indices = @transform_2, window_bounds = array<i64: 1, 768>}, {pipeline_mode = #tpu.pipeline_mode<synchronous>, transform_indices = @transform_3, window_bounds = array<i64: 768, 128>}, {pipeline_mode = #tpu.pipeline_mode<synchronous>, transform_indices = @transform_4, window_bounds = array<i64: 1, 128>}, {pipeline_mode = #tpu.pipeline_mode<synchronous>, transform_indices = @transform_5, window_bounds = array<i64: 1, 128>}, {pipeline_mode = #tpu.pipeline_mode<synchronous>, transform_indices = @transform_6, window_bounds = array<i64: 1, 1>}, {transform_indices = @transform_7, window_bounds = array<i64: 16, 1>}]} {
    %c0 = arith.constant 0 : index
    %c0_0 = arith.constant 0 : index
    %0 = vector.load %arg1[%c0, %c0_0] : memref<16x256xf32, #tpu.memory_space<vmem>>, vector<16x256xf32>
    %1 = arith.truncf %0 : vector<16x256xf32> to vector<16x256xbf16>
    %c0_1 = arith.constant 0 : index
    %c0_2 = arith.constant 0 : index
    %2 = vector.load %arg2[%c0_1, %c0_2] : memref<256x768xbf16, #tpu.memory_space<vmem>>, vector<256x768xbf16>
    %cst = arith.constant dense<0.000000e+00> : vector<16x768xf32>
    %3 = tpu.matmul %1, %2, %cst {dimension_numbers = #tpu.dot_dimension_numbers<[1], [0], [0], [1], [0, 0, 1, 1], [], []>} : vector<16x256xbf16>, vector<256x768xbf16>, vector<16x768xf32> -> vector<16x768xf32>
    %c0_3 = arith.constant 0 : index
    %c0_4 = arith.constant 0 : index
    %4 = vector.load %arg3[%c0_3, %c0_4] : memref<1x768xf32, #tpu.memory_space<vmem>>, vector<1x768xf32>
    %5 = vector.broadcast %4 : vector<1x768xf32> to vector<16x768xf32>
    %6 = arith.addf %3, %5 : vector<16x768xf32>
    %cst_5 = arith.constant 0.000000e+00 : f32
    %7 = vector.broadcast %cst_5 : f32 to vector<16x768xf32>
    %8 = arith.maximumf %6, %7 : vector<16x768xf32>
    %9 = arith.truncf %8 : vector<16x768xf32> to vector<16x768xbf16>
    %c0_6 = arith.constant 0 : index
    %c0_7 = arith.constant 0 : index
    %10 = vector.load %arg4[%c0_6, %c0_7] : memref<768x128xbf16, #tpu.memory_space<vmem>>, vector<768x128xbf16>
    %cst_8 = arith.constant dense<0.000000e+00> : vector<16x128xf32>
    %11 = tpu.matmul %9, %10, %cst_8 {dimension_numbers = #tpu.dot_dimension_numbers<[1], [0], [0], [1], [0, 0, 1, 1], [], []>} : vector<16x768xbf16>, vector<768x128xbf16>, vector<16x128xf32> -> vector<16x128xf32>
    %c0_9 = arith.constant 0 : index
    %c0_10 = arith.constant 0 : index
    %12 = vector.load %arg5[%c0_9, %c0_10] : memref<1x128xf32, #tpu.memory_space<vmem>>, vector<1x128xf32>
    %13 = vector.broadcast %12 : vector<1x128xf32> to vector<16x128xf32>
    %14 = arith.addf %11, %13 : vector<16x128xf32>
    %cst_11 = arith.constant 0.000000e+00 : f32
    %15 = vector.broadcast %cst_11 : f32 to vector<16x128xf32>
    %16 = arith.maximumf %14, %15 : vector<16x128xf32>
    %c0_12 = arith.constant 0 : index
    %c0_13 = arith.constant 0 : index
    %17 = vector.load %arg6[%c0_12, %c0_13] : memref<1x128xf32, #tpu.memory_space<vmem>>, vector<1x128xf32>
    %18 = vector.broadcast %17 : vector<1x128xf32> to vector<16x128xf32>
    %19 = arith.mulf %16, %18 : vector<16x128xf32>
    %cst_14 = arith.constant dense<0.000000e+00> : vector<16xf32>
    %20 = vector.multi_reduction <add>, %19, %cst_14 [1] : vector<16x128xf32> to vector<16xf32>
    %21 = vector.shape_cast %20 : vector<16xf32> to vector<16x1xf32>
    %c0_15 = arith.constant 0 : index
    %c0_16 = arith.constant 0 : index
    %22 = vector.load %arg7[%c0_15, %c0_16] : memref<1x1xf32, #tpu.memory_space<vmem>>, vector<1x1xf32>
    %23 = vector.broadcast %22 : vector<1x1xf32> to vector<16x1xf32>
    %24 = arith.addf %21, %23 : vector<16x1xf32>
    %25 = arith.negf %24 : vector<16x1xf32>
    %26 = math.exp %25 : vector<16x1xf32>
    %cst_17 = arith.constant 1.000000e+00 : f32
    %27 = vector.broadcast %cst_17 : f32 to vector<16x1xf32>
    %28 = arith.addf %27, %26 : vector<16x1xf32>
    %29 = arith.divf %27, %28 : vector<16x1xf32>
    %c0_18 = arith.constant 0 : index
    %c0_19 = arith.constant 0 : index
    %30 = vector.load %arg8[%c0_18, %c0_19] : memref<16x1xf32, #tpu.memory_space<vmem>>, vector<16x1xf32>
    tpu.vector_store %arg8[%c0_18, %c0_19], %29 {strides = array<i32>} : memref<16x1xf32, #tpu.memory_space<vmem>>, vector<16x1xf32>,
    return
  }
  func.func @transform_0(%arg0: i32) -> (i32, i32) {
    %c0_i32 = arith.constant 0 : i32
    %c0_i32_0 = arith.constant 0 : i32
    return %arg0, %c0_i32 : i32, i32
  }
  func.func @transform_1(%arg0: i32) -> (i32, i32) {
    %c0_i32 = arith.constant 0 : i32
    %c0_i32_0 = arith.constant 0 : i32
    %c0_i32_1 = arith.constant 0 : i32
    return %c0_i32, %c0_i32_0 : i32, i32
  }
  func.func @transform_2(%arg0: i32) -> (i32, i32) {
    %c0_i32 = arith.constant 0 : i32
    %c0_i32_0 = arith.constant 0 : i32
    %c0_i32_1 = arith.constant 0 : i32
    return %c0_i32, %c0_i32_0 : i32, i32
  }
  func.func @transform_3(%arg0: i32) -> (i32, i32) {
    %c0_i32 = arith.constant 0 : i32
    %c0_i32_0 = arith.constant 0 : i32
    %c0_i32_1 = arith.constant 0 : i32
    return %c0_i32, %c0_i32_0 : i32, i32
  }
  func.func @transform_4(%arg0: i32) -> (i32, i32) {
    %c0_i32 = arith.constant 0 : i32
    %c0_i32_0 = arith.constant 0 : i32
    %c0_i32_1 = arith.constant 0 : i32
    return %c0_i32, %c0_i32_0 : i32, i32
  }
  func.func @transform_5(%arg0: i32) -> (i32, i32) {
    %c0_i32 = arith.constant 0 : i32
    %c0_i32_0 = arith.constant 0 : i32
    %c0_i32_1 = arith.constant 0 : i32
    return %c0_i32, %c0_i32_0 : i32, i32
  }
  func.func @transform_6(%arg0: i32) -> (i32, i32) {
    %c0_i32 = arith.constant 0 : i32
    %c0_i32_0 = arith.constant 0 : i32
    %c0_i32_1 = arith.constant 0 : i32
    return %c0_i32, %c0_i32_0 : i32, i32
  }
  func.func @transform_7(%arg0: i32) -> (i32, i32) {
    %c0_i32 = arith.constant 0 : i32
    %c0_i32_0 = arith.constant 0 : i32
    return %arg0, %c0_i32 : i32, i32
  }
}

</mosaic_0001>

<llo_original>
// kernel: tpu_custom_call.1
$region0: #{tpu_custom_call.1}
  #allocation0 [shape = 'u32[]', space=smem, size = 0x4, offset = 0x4, fixed_abs, tag = 'smem constant byte address 0x4 - core index']
  #allocation1 [shape = 'u32[72,128]{1,0:T(1,128)}', space=vmem, size = 0x9000, scoped, tag = 'internal scratch']
  #allocation2 [shape = 'f32[1,1]{1,0:T(1,128)S(1)}', space=vmem, size = 0x200, scoped, tag = 'scoped memory for tpu_custom_call.1']
  %s0 = inlined_call_operand.hbm [shape: f32[16,256], index: 0, kind: input, shape index: {}]
  %s1 = inlined_call_operand.hbm [shape: bf16[256,768], index: 1, kind: input, shape index: {}]
  %s2 = inlined_call_operand.hbm [shape: f32[1,768], index: 2, kind: input, shape index: {}]
  %s3 = inlined_call_operand.hbm [shape: bf16[768,128], index: 3, kind: input, shape index: {}]
  %s4 = inlined_call_operand.vmem [shape: f32[1,128], index: 4, kind: input, shape index: {}]
  %s5 = inlined_call_operand.vmem [shape: f32[1,128], index: 5, kind: input, shape index: {}]
  %s6 = inlined_call_operand.<no memory space> [shape: f32[1,1], index: 6, kind: input, shape index: {}]
  %s7 = inlined_call_operand.vmem [shape: f32[16,1], index: 7, kind: output, shape index: {}]
  %s8 = sld [smem:[#allocation0]]
  $region54: #{tpu_custom_call.1} parent=0
    _
  %s10 = ssub.s32 1, %s8
  %s11 = scalar_select 0, %s10, %s8
  %v12 = vstv %s6
  %13 = vst [vmem:[#allocation2] sm:$0x1] %v12
  $region1: #{tpu_custom_call.1} parent=0
    #allocation3 [shape = 'u8[16384]{0}', space=vmem, size = 0x4000, scoped, tag = 'input window, operand 0, single buffered']
    #allocation4 [shape = 's32[1]{0}', space=sflag, size = 0x4, scoped, tag = 'scoped memory for tpu_custom_call.1']
    #allocation5 [shape = 'u8[393216]{0}', space=vmem, size = 0x60000, scoped, tag = 'input window, operand 1, single buffered']
    #allocation6 [shape = 's32[1]{0}', space=sflag, size = 0x4, scoped, tag = 'scoped memory for tpu_custom_call.1']
    #allocation7 [shape = 'u8[3072]{0}', space=vmem, size = 0xc00, scoped, tag = 'input window, operand 2, single buffered']
    #allocation8 [shape = 'u8[196608]{0}', space=vmem, size = 0x30000, scoped, tag = 'input window, operand 3, single buffered']
    #allocation9 [shape = 's32[1]{0}', space=sflag, size = 0x4, scoped, tag = 'scoped memory for tpu_custom_call.1']
    %14 = vsyncpa [#allocation4], 0
    %15 = vsyncpa [#allocation6], 0
    %16 = vsyncpa [#allocation9], 0
    // Predicated region
    $region2: #{tpu_custom_call.1} parent=1 // pred_check
      _
    $region3: #{tpu_custom_call.1} parent=1 // pred_check_branch
      %18 = sbr.rel (0) target = $region5
    $region4: #{tpu_custom_call.1} parent=1 // pred_region
      %20 = vsyncadd [#allocation4], 0
      %s21 = sshll.u32 %s0, 4
      %s22 = int_to_ptr.hbm [resolvable:$true] %s21
      %s23 = sshll.u32 [#allocation3], 4
      %s24 = int_to_ptr.vmem [resolvable:$true] %s23
      %29 = dma.hbm_to_vmem [thread:$0]  %s22, 512, %s24, [#allocation4], 256, 256, 16
    $region5: #{tpu_custom_call.1} parent=1 // pred_fallthru
      _
    // Predicated region
    $region6: #{tpu_custom_call.1} parent=1 // pred_check
      _
    $region7: #{tpu_custom_call.1} parent=1 // pred_check_branch
      %31 = sbr.rel (0) target = $region9
    $region8: #{tpu_custom_call.1} parent=1 // pred_region
      %33 = vsyncadd [#allocation6], 0
      %s34 = sshll.u32 %s1, 4
      %s35 = int_to_ptr.hbm [resolvable:$true] %s34
      %s36 = sshll.u32 [#allocation5], 4
      %s37 = int_to_ptr.vmem [resolvable:$true] %s36
      %42 = dma.hbm_to_vmem [thread:$0]  %s35, 12288, %s37, [#allocation6], 384, 384, 24
    $region9: #{tpu_custom_call.1} parent=1 // pred_fallthru
      _
    // Predicated region
    $region10: #{tpu_custom_call.1} parent=1 // pred_check
      _
    $region11: #{tpu_custom_call.1} parent=1 // pred_check_branch
      %44 = sbr.rel (0) target = $region13
    $region12: #{tpu_custom_call.1} parent=1 // pred_region
      %46 = vsyncadd [#allocation6], 0
      %s48 = sshll.u32 %s2, 4
      %s49 = int_to_ptr.hbm [resolvable:$true] %s48
      %s50 = sshll.u32 [#allocation7], 4
      %s51 = int_to_ptr.vmem [resolvable:$true] %s50
      %53 = dma.hbm_to_vmem [thread:$0]  %s49, 96, %s51, [#allocation6]
    $region13: #{tpu_custom_call.1} parent=1 // pred_fallthru
      _
    // Predicated region
    $region14: #{tpu_custom_call.1} parent=1 // pred_check
      _
    $region15: #{tpu_custom_call.1} parent=1 // pred_check_branch
      %55 = sbr.rel (0) target = $region17
    $region16: #{tpu_custom_call.1} parent=1 // pred_region
      %57 = vsyncadd [#allocation9], 0
      %s58 = sshll.u32 %s3, 4
      %s59 = int_to_ptr.hbm [resolvable:$true] %s58
      %s60 = sshll.u32 [#allocation8], 4
      %s61 = int_to_ptr.vmem [resolvable:$true] %s60
      %66 = dma.hbm_to_vmem [thread:$0]  %s59, 6144, %s61, [#allocation9], 64, 64, 4
    $region17: #{tpu_custom_call.1} parent=1 // pred_fallthru
      _
    // Predicated region
    $region18: #{tpu_custom_call.1} parent=1 // pred_check
      _
    $region19: #{tpu_custom_call.1} parent=1 // pred_check_branch
      %68 = sbr.rel (0) target = $region21
    $region20: #{tpu_custom_call.1} parent=1 // pred_region
      _
    $region21: #{tpu_custom_call.1} parent=1 // pred_fallthru
      _
    // Predicated region
    $region22: #{tpu_custom_call.1} parent=1 // pred_check
      _
    $region23: #{tpu_custom_call.1} parent=1 // pred_check_branch
      %70 = sbr.rel (0) target = $region25
    $region24: #{tpu_custom_call.1} parent=1 // pred_region
      _
    $region25: #{tpu_custom_call.1} parent=1 // pred_fallthru
      _
    // Predicated region
    $region26: #{tpu_custom_call.1} parent=1 // pred_check
      _
    $region27: #{tpu_custom_call.1} parent=1 // pred_check_branch
      %72 = sbr.rel (0) target = $region29
    $region28: #{tpu_custom_call.1} parent=1 // pred_region
      _
    $region29: #{tpu_custom_call.1} parent=1 // pred_fallthru
      _
    // Predicated region
    $region30: #{tpu_custom_call.1} parent=1 // pred_check
      _
    $region31: #{tpu_custom_call.1} parent=1 // pred_check_branch
      %74 = sbr.rel (0) target = $region33
    $region32: #{tpu_custom_call.1} parent=1 // pred_region
      %76 = dma.done [#allocation4], 512
    $region33: #{tpu_custom_call.1} parent=1 // pred_fallthru
      _
    // Predicated region
    $region34: #{tpu_custom_call.1} parent=1 // pred_check
      _
    $region35: #{tpu_custom_call.1} parent=1 // pred_check_branch
      %78 = sbr.rel (0) target = $region37
    $region36: #{tpu_custom_call.1} parent=1 // pred_region
      %80 = dma.done [#allocation6], 12288
    $region37: #{tpu_custom_call.1} parent=1 // pred_fallthru
      _
    // Predicated region
    $region38: #{tpu_custom_call.1} parent=1 // pred_check
      _
    $region39: #{tpu_custom_call.1} parent=1 // pred_check_branch
      %82 = sbr.rel (0) target = $region41
    $region40: #{tpu_custom_call.1} parent=1 // pred_region
      %84 = dma.done [#allocation6], 96
    $region41: #{tpu_custom_call.1} parent=1 // pred_fallthru
      _
    // Predicated region
    $region42: #{tpu_custom_call.1} parent=1 // pred_check
      _
    $region43: #{tpu_custom_call.1} parent=1 // pred_check_branch
      %86 = sbr.rel (0) target = $region45
    $region44: #{tpu_custom_call.1} parent=1 // pred_region
      %88 = dma.done [#allocation9], 6144
    $region45: #{tpu_custom_call.1} parent=1 // pred_fallthru
      _
    %v89 = vld [vmem:[#allocation3] sm:$0xff]
    %v90 = vld [vmem:[#allocation3 + $0x8] sm:$0xff]
    %v91 = vld [vmem:[#allocation3 + $0x10] sm:$0xff]
    %v92 = vld [vmem:[#allocation3 + $0x18] sm:$0xff]
    %v93 = vpack.c.bf16 %v91, %v89
    %v94 = vpack.c.bf16 %v92, %v90
    %v95 = vld [vmem:[#allocation5] sm:$0xff]
    %v96 = vld [vmem:[#allocation5 + $0x8] sm:$0xff]
    %v97 = vld [vmem:[#allocation5 + $0x10] sm:$0xff]
    %v98 = vld [vmem:[#allocation5 + $0x18] sm:$0xff]
    %v99 = vld [vmem:[#allocation5 + $0x20] sm:$0xff]
    %v100 = vld [vmem:[#allocation5 + $0x28] sm:$0xff]
    %v101 = vld [vmem:[#allocation5 + $0x30] sm:$0xff]
    %v102 = vld [vmem:[#allocation5 + $0x38] sm:$0xff]
    %v103 = vld [vmem:[#allocation5 + $0x40] sm:$0xff]
    %v104 = vld [vmem:[#allocation5 + $0x48] sm:$0xff]
    %v105 = vld [vmem:[#allocation5 + $0x50] sm:$0xff]
    %v106 = vld [vmem:[#allocation5 + $0x58] sm:$0xff]
    %v107 = vld [vmem:[#allocation5 + $0x60] sm:$0xff]
    %v108 = vld [vmem:[#allocation5 + $0x68] sm:$0xff]
    %v109 = vld [vmem:[#allocation5 + $0x70] sm:$0xff]
    %v110 = vld [vmem:[#allocation5 + $0x78] sm:$0xff]
    %v111 = vld [vmem:[#allocation5 + $0x80] sm:$0xff]
    %v112 = vld [vmem:[#allocation5 + $0x88] sm:$0xff]
    %v113 = vld [vmem:[#allocation5 + $0x90] sm:$0xff]
    %v114 = vld [vmem:[#allocation5 + $0x98] sm:$0xff]
    %v115 = vld [vmem:[#allocation5 + $0xa0] sm:$0xff]
    %v116 = vld [vmem:[#allocation5 + $0xa8] sm:$0xff]
    %v117 = vld [vmem:[#allocation5 + $0xb0] sm:$0xff]
    %v118 = vld [vmem:[#allocation5 + $0xb8] sm:$0xff]
    %v119 = vld [vmem:[#allocation5 + $0xc0] sm:$0xff]
    %v120 = vld [vmem:[#allocation5 + $0xc8] sm:$0xff]
    %v121 = vld [vmem:[#allocation5 + $0xd0] sm:$0xff]
    %v122 = vld [vmem:[#allocation5 + $0xd8] sm:$0xff]
    %v123 = vld [vmem:[#allocation5 + $0xe0] sm:$0xff]
    %v124 = vld [vmem:[#allocation5 + $0xe8] sm:$0xff]
    %v125 = vld [vmem:[#allocation5 + $0xf0] sm:$0xff]
    %v126 = vld [vmem:[#allocation5 + $0xf8] sm:$0xff]
    %v127 = vld [vmem:[#allocation5 + $0x100] sm:$0xff]
    %v128 = vld [vmem:[#allocation5 + $0x108] sm:$0xff]
    %v129 = vld [vmem:[#allocation5 + $0x110] sm:$0xff]
    %v130 = vld [vmem:[#allocation5 + $0x118] sm:$0xff]
    %v131 = vld [vmem:[#allocation5 + $0x120] sm:$0xff]
    %v132 = vld [vmem:[#allocation5 + $0x128] sm:$0xff]
    %v133 = vld [vmem:[#allocation5 + $0x130] sm:$0xff]
    %v134 = vld [vmem:[#allocation5 + $0x138] sm:$0xff]
    %v135 = vld [vmem:[#allocation5 + $0x140] sm:$0xff]
    %v136 = vld [vmem:[#allocation5 + $0x148] sm:$0xff]
    %v137 = vld [vmem:[#allocation5 + $0x150] sm:$0xff]
    %v138 = vld [vmem:[#allocation5 + $0x158] sm:$0xff]
    %v139 = vld [vmem:[#allocation5 + $0x160] sm:$0xff]
    %v140 = vld [vmem:[#allocation5 + $0x168] sm:$0xff]
    %v141 = vld [vmem:[#allocation5 + $0x170] sm:$0xff]
    %v142 = vld [vmem:[#allocation5 + $0x178] sm:$0xff]
    %v143 = vld [vmem:[#allocation5 + $0x180] sm:$0xff]
    %v144 = vld [vmem:[#allocation5 + $0x188] sm:$0xff]
    %v145 = vld [vmem:[#allocation5 + $0x190] sm:$0xff]
    %v146 = vld [vmem:[#allocation5 + $0x198] sm:$0xff]
    %v147 = vld [vmem:[#allocation5 + $0x1a0] sm:$0xff]
    %v148 = vld [vmem:[#allocation5 + $0x1a8] sm:$0xff]
    %v149 = vld [vmem:[#allocation5 + $0x1b0] sm:$0xff]
    %v150 = vld [vmem:[#allocation5 + $0x1b8] sm:$0xff]
    %v151 = vld [vmem:[#allocation5 + $0x1c0] sm:$0xff]
    %v152 = vld [vmem:[#allocation5 + $0x1c8] sm:$0xff]
    %v153 = vld [vmem:[#allocation5 + $0x1d0] sm:$0xff]
    %v154 = vld [vmem:[#allocation5 + $0x1d8] sm:$0xff]
    %v155 = vld [vmem:[#allocation5 + $0x1e0] sm:$0xff]
    %v156 = vld [vmem:[#allocation5 + $0x1e8] sm:$0xff]
    %v157 = vld [vmem:[#allocation5 + $0x1f0] sm:$0xff]
    %v158 = vld [vmem:[#allocation5 + $0x1f8] sm:$0xff]
    %v159 = vld [vmem:[#allocation5 + $0x200] sm:$0xff]
    %v160 = vld [vmem:[#allocation5 + $0x208] sm:$0xff]
    %v161 = vld [vmem:[#allocation5 + $0x210] sm:$0xff]
    %v162 = vld [vmem:[#allocation5 + $0x218] sm:$0xff]
    %v163 = vld [vmem:[#allocation5 + $0x220] sm:$0xff]
    %v164 = vld [vmem:[#allocation5 + $0x228] sm:$0xff]
    %v165 = vld [vmem:[#allocation5 + $0x230] sm:$0xff]
    %v166 = vld [vmem:[#allocation5 + $0x238] sm:$0xff]
    %v167 = vld [vmem:[#allocation5 + $0x240] sm:$0xff]
    %v168 = vld [vmem:[#allocation5 + $0x248] sm:$0xff]
    %v169 = vld [vmem:[#allocation5 + $0x250] sm:$0xff]
    %v170 = vld [vmem:[#allocation5 + $0x258] sm:$0xff]
    %v171 = vld [vmem:[#allocation5 + $0x260] sm:$0xff]
    %v172 = vld [vmem:[#allocation5 + $0x268] sm:$0xff]
    %v173 = vld [vmem:[#allocation5 + $0x270] sm:$0xff]
    %v174 = vld [vmem:[#allocation5 + $0x278] sm:$0xff]
    %v175 = vld [vmem:[#allocation5 + $0x280] sm:$0xff]
    %v176 = vld [vmem:[#allocation5 + $0x288] sm:$0xff]
    %v177 = vld [vmem:[#allocation5 + $0x290] sm:$0xff]
    %v178 = vld [vmem:[#allocation5 + $0x298] sm:$0xff]
    %v179 = vld [vmem:[#allocation5 + $0x2a0] sm:$0xff]
    %v180 = vld [vmem:[#allocation5 + $0x2a8] sm:$0xff]
    %v181 = vld [vmem:[#allocation5 + $0x2b0] sm:$0xff]
    %v182 = vld [vmem:[#allocation5 + $0x2b8] sm:$0xff]
    %v183 = vld [vmem:[#allocation5 + $0x2c0] sm:$0xff]
    %v184 = vld [vmem:[#allocation5 + $0x2c8] sm:$0xff]
    %v185 = vld [vmem:[#allocation5 + $0x2d0] sm:$0xff]
    %v186 = vld [vmem:[#allocation5 + $0x2d8] sm:$0xff]
    %v187 = vld [vmem:[#allocation5 + $0x2e0] sm:$0xff]
    %v188 = vld [vmem:[#allocation5 + $0x2e8] sm:$0xff]
    %v189 = vld [vmem:[#allocation5 + $0x2f0] sm:$0xff]
    %v190 = vld [vmem:[#allocation5 + $0x2f8] sm:$0xff]
    %v191 = vld [vmem:[#allocation7] sm:$0x3f]
    %v193 = vperm.slane %v191, 0
    %v194 = vperm.slane %v191, 1
    %v195 = vperm.slane %v191, 2
    %v196 = vperm.slane %v191, 3
    %v197 = vperm.slane %v191, 4
    %v198 = vperm.slane %v191, 5
    %v301 = vunpack.c.l.b16 %v95
    %v302 = vunpack.c.h.b16 %v95
    %v303 = vunpack.c.l.b16 %v96
    %v304 = vunpack.c.h.b16 %v96
    %v305 = vunpack.c.l.b16 %v97
    %v306 = vunpack.c.h.b16 %v97
    %v307 = vunpack.c.l.b16 %v98
    %v308 = vunpack.c.h.b16 %v98
    %v309 = vunpack.c.l.b16 %v99
    %v310 = vunpack.c.h.b16 %v99
    %v311 = vunpack.c.l.b16 %v100
    %v312 = vunpack.c.h.b16 %v100
    %v313 = vunpack.c.l.b16 %v101
    %v314 = vunpack.c.h.b16 %v101
    %v315 = vunpack.c.l.b16 %v102
    %v316 = vunpack.c.h.b16 %v102
    %v317 = vunpack.c.l.b16 %v103
    %v318 = vunpack.c.h.b16 %v103
    %v319 = vunpack.c.l.b16 %v104
    %v320 = vunpack.c.h.b16 %v104
    %v321 = vunpack.c.l.b16 %v105
    %v322 = vunpack.c.h.b16 %v105
    %v323 = vunpack.c.l.b16 %v106
    %v324 = vunpack.c.h.b16 %v106
    %v325 = vunpack.c.l.b16 %v107
    %v326 = vunpack.c.h.b16 %v107
    %v327 = vunpack.c.l.b16 %v108
    %v328 = vunpack.c.h.b16 %v108
    %v329 = vunpack.c.l.b16 %v109
    %v330 = vunpack.c.h.b16 %v109
    %v331 = vunpack.c.l.b16 %v110
    %v332 = vunpack.c.h.b16 %v110
    %v333 = vunpack.c.l.b16 %v111
    %v334 = vunpack.c.h.b16 %v111
    %v335 = vunpack.c.l.b16 %v112
    %v336 = vunpack.c.h.b16 %v112
    %v337 = vunpack.c.l.b16 %v113
    %v338 = vunpack.c.h.b16 %v113
    %v339 = vunpack.c.l.b16 %v114
    %v340 = vunpack.c.h.b16 %v114
    %v341 = vunpack.c.l.b16 %v115
    %v342 = vunpack.c.h.b16 %v115
    %v343 = vunpack.c.l.b16 %v116
    %v344 = vunpack.c.h.b16 %v116
    %v345 = vunpack.c.l.b16 %v117
    %v346 = vunpack.c.h.b16 %v117
    %v347 = vunpack.c.l.b16 %v118
    %v348 = vunpack.c.h.b16 %v118
    %v349 = vunpack.c.l.b16 %v119
    %v350 = vunpack.c.h.b16 %v119
    %v351 = vunpack.c.l.b16 %v120
    %v352 = vunpack.c.h.b16 %v120
    %v353 = vunpack.c.l.b16 %v121
    %v354 = vunpack.c.h.b16 %v121
    %v355 = vunpack.c.l.b16 %v122
    %v356 = vunpack.c.h.b16 %v122
    %v357 = vunpack.c.l.b16 %v123
    %v358 = vunpack.c.h.b16 %v123
    %v359 = vunpack.c.l.b16 %v124
    %v360 = vunpack.c.h.b16 %v124
    %v361 = vunpack.c.l.b16 %v125
    %v362 = vunpack.c.h.b16 %v125
    %v363 = vunpack.c.l.b16 %v126
    %v364 = vunpack.c.h.b16 %v126
    %v365 = vunpack.c.l.b16 %v127
    %v366 = vunpack.c.h.b16 %v127
    %v367 = vunpack.c.l.b16 %v128
    %v368 = vunpack.c.h.b16 %v128
    %v369 = vunpack.c.l.b16 %v129
    %v370 = vunpack.c.h.b16 %v129
    %v371 = vunpack.c.l.b16 %v130
    %v372 = vunpack.c.h.b16 %v130
    %v373 = vunpack.c.l.b16 %v131
    %v374 = vunpack.c.h.b16 %v131
    %v375 = vunpack.c.l.b16 %v132
    %v376 = vunpack.c.h.b16 %v132
    %v377 = vunpack.c.l.b16 %v133
    %v378 = vunpack.c.h.b16 %v133
    %v379 = vunpack.c.l.b16 %v134
    %v380 = vunpack.c.h.b16 %v134
    %v381 = vunpack.c.l.b16 %v135
    %v382 = vunpack.c.h.b16 %v135
    %v383 = vunpack.c.l.b16 %v136
    %v384 = vunpack.c.h.b16 %v136
    %v385 = vunpack.c.l.b16 %v137
    %v386 = vunpack.c.h.b16 %v137
    %v387 = vunpack.c.l.b16 %v138
    %v388 = vunpack.c.h.b16 %v138
    %v389 = vunpack.c.l.b16 %v139
    %v390 = vunpack.c.h.b16 %v139
    %v391 = vunpack.c.l.b16 %v140
    %v392 = vunpack.c.h.b16 %v140
    %v393 = vunpack.c.l.b16 %v141
    %v394 = vunpack.c.h.b16 %v141
    %v395 = vunpack.c.l.b16 %v142
    %v396 = vunpack.c.h.b16 %v142
    %v397 = vunpack.c.l.b16 %v143
    %v398 = vunpack.c.h.b16 %v143
    %v399 = vunpack.c.l.b16 %v144
    %v400 = vunpack.c.h.b16 %v144
    %v401 = vunpack.c.l.b16 %v145
    %v402 = vunpack.c.h.b16 %v145
    %v403 = vunpack.c.l.b16 %v146
    %v404 = vunpack.c.h.b16 %v146
    %v405 = vunpack.c.l.b16 %v147
    %v406 = vunpack.c.h.b16 %v147
    %v407 = vunpack.c.l.b16 %v148
    %v408 = vunpack.c.h.b16 %v148
    %v409 = vunpack.c.l.b16 %v149
    %v410 = vunpack.c.h.b16 %v149
    %v411 = vunpack.c.l.b16 %v150
    %v412 = vunpack.c.h.b16 %v150
    %v413 = vunpack.c.l.b16 %v151
    %v414 = vunpack.c.h.b16 %v151
    %v415 = vunpack.c.l.b16 %v152
    %v416 = vunpack.c.h.b16 %v152
    %v417 = vunpack.c.l.b16 %v153
    %v418 = vunpack.c.h.b16 %v153
    %v419 = vunpack.c.l.b16 %v154
    %v420 = vunpack.c.h.b16 %v154
    %v421 = vunpack.c.l.b16 %v155
    %v422 = vunpack.c.h.b16 %v155
    %v423 = vunpack.c.l.b16 %v156
    %v424 = vunpack.c.h.b16 %v156
    %v425 = vunpack.c.l.b16 %v157
    %v426 = vunpack.c.h.b16 %v157
    %v427 = vunpack.c.l.b16 %v158
    %v428 = vunpack.c.h.b16 %v158
    %v429 = vunpack.c.l.b16 %v159
    %v430 = vunpack.c.h.b16 %v159
    %v431 = vunpack.c.l.b16 %v160
    %v432 = vunpack.c.h.b16 %v160
    %v433 = vunpack.c.l.b16 %v161
    %v434 = vunpack.c.h.b16 %v161
    %v435 = vunpack.c.l.b16 %v162
    %v436 = vunpack.c.h.b16 %v162
    %v437 = vunpack.c.l.b16 %v163
    %v438 = vunpack.c.h.b16 %v163
    %v439 = vunpack.c.l.b16 %v164
    %v440 = vunpack.c.h.b16 %v164
    %v441 = vunpack.c.l.b16 %v165
    %v442 = vunpack.c.h.b16 %v165
    %v443 = vunpack.c.l.b16 %v166
    %v444 = vunpack.c.h.b16 %v166
    %v445 = vunpack.c.l.b16 %v167
    %v446 = vunpack.c.h.b16 %v167
    %v447 = vunpack.c.l.b16 %v168
    %v448 = vunpack.c.h.b16 %v168
    %v449 = vunpack.c.l.b16 %v169
    %v450 = vunpack.c.h.b16 %v169
    %v451 = vunpack.c.l.b16 %v170
    %v452 = vunpack.c.h.b16 %v170
    %v453 = vunpack.c.l.b16 %v171
    %v454 = vunpack.c.h.b16 %v171
    %v455 = vunpack.c.l.b16 %v172
    %v456 = vunpack.c.h.b16 %v172
    %v457 = vunpack.c.l.b16 %v173
    %v458 = vunpack.c.h.b16 %v173
    %v459 = vunpack.c.l.b16 %v174
    %v460 = vunpack.c.h.b16 %v174
    %v461 = vunpack.c.l.b16 %v175
    %v462 = vunpack.c.h.b16 %v175
    %v463 = vunpack.c.l.b16 %v176
    %v464 = vunpack.c.h.b16 %v176
    %v465 = vunpack.c.l.b16 %v177
    %v466 = vunpack.c.h.b16 %v177
    %v467 = vunpack.c.l.b16 %v178
    %v468 = vunpack.c.h.b16 %v178
    %v469 = vunpack.c.l.b16 %v179
    %v470 = vunpack.c.h.b16 %v179
    %v471 = vunpack.c.l.b16 %v180
    %v472 = vunpack.c.h.b16 %v180
    %v473 = vunpack.c.l.b16 %v181
    %v474 = vunpack.c.h.b16 %v181
    %v475 = vunpack.c.l.b16 %v182
    %v476 = vunpack.c.h.b16 %v182
    %v477 = vunpack.c.l.b16 %v183
    %v478 = vunpack.c.h.b16 %v183
    %v479 = vunpack.c.l.b16 %v184
    %v480 = vunpack.c.h.b16 %v184
    %v481 = vunpack.c.l.b16 %v185
    %v482 = vunpack.c.h.b16 %v185
    %v483 = vunpack.c.l.b16 %v186
    %v484 = vunpack.c.h.b16 %v186
    %v485 = vunpack.c.l.b16 %v187
    %v486 = vunpack.c.h.b16 %v187
    %v487 = vunpack.c.l.b16 %v188
    %v488 = vunpack.c.h.b16 %v188
    %v489 = vunpack.c.l.b16 %v189
    %v490 = vunpack.c.h.b16 %v189
    %v491 = vunpack.c.l.b16 %v190
    %v492 = vunpack.c.h.b16 %v190
    %v493 = vpack.c.b16 %v307, %v301
    %v494 = vpack.c.b16 %v308, %v302
    %v495 = vpack.c.b16 %v309, %v303
    %v496 = vpack.c.b16 %v310, %v304
    %v497 = vpack.c.b16 %v311, %v305
    %v498 = vpack.c.b16 %v312, %v306
    %v499 = vpack.c.b16 %v319, %v313
    %v500 = vpack.c.b16 %v320, %v314
    %v501 = vpack.c.b16 %v321, %v315
    %v502 = vpack.c.b16 %v322, %v316
    %v503 = vpack.c.b16 %v323, %v317
    %v504 = vpack.c.b16 %v324, %v318
    %v505 = vpack.c.b16 %v331, %v325
    %v506 = vpack.c.b16 %v332, %v326
    %v507 = vpack.c.b16 %v333, %v327
    %v508 = vpack.c.b16 %v334, %v328
    %v509 = vpack.c.b16 %v335, %v329
    %v510 = vpack.c.b16 %v336, %v330
    %v511 = vpack.c.b16 %v343, %v337
    %v512 = vpack.c.b16 %v344, %v338
    %v513 = vpack.c.b16 %v345, %v339
    %v514 = vpack.c.b16 %v346, %v340
    %v515 = vpack.c.b16 %v347, %v341
    %v516 = vpack.c.b16 %v348, %v342
    %v517 = vpack.c.b16 %v355, %v349
    %v518 = vpack.c.b16 %v356, %v350
    %v519 = vpack.c.b16 %v357, %v351
    %v520 = vpack.c.b16 %v358, %v352
    %v521 = vpack.c.b16 %v359, %v353
    %v522 = vpack.c.b16 %v360, %v354
    %v523 = vpack.c.b16 %v367, %v361
    %v524 = vpack.c.b16 %v368, %v362
    %v525 = vpack.c.b16 %v369, %v363
    %v526 = vpack.c.b16 %v370, %v364
    %v527 = vpack.c.b16 %v371, %v365
    %v528 = vpack.c.b16 %v372, %v366
    %v529 = vpack.c.b16 %v379, %v373
    %v530 = vpack.c.b16 %v380, %v374
    %v531 = vpack.c.b16 %v381, %v375
    %v532 = vpack.c.b16 %v382, %v376
    %v533 = vpack.c.b16 %v383, %v377
    %v534 = vpack.c.b16 %v384, %v378
    %v535 = vpack.c.b16 %v391, %v385
    %v536 = vpack.c.b16 %v392, %v386
    %v537 = vpack.c.b16 %v393, %v387
    %v538 = vpack.c.b16 %v394, %v388
    %v539 = vpack.c.b16 %v395, %v389
    %v540 = vpack.c.b16 %v396, %v390
    %v541 = vpack.c.b16 %v403, %v397
    %v542 = vpack.c.b16 %v404, %v398
    %v543 = vpack.c.b16 %v405, %v399
    %v544 = vpack.c.b16 %v406, %v400
    %v545 = vpack.c.b16 %v407, %v401
    %v546 = vpack.c.b16 %v408, %v402
    %v547 = vpack.c.b16 %v415, %v409
    %v548 = vpack.c.b16 %v416, %v410
    %v549 = vpack.c.b16 %v417, %v411
    %v550 = vpack.c.b16 %v418, %v412
    %v551 = vpack.c.b16 %v419, %v413
    %v552 = vpack.c.b16 %v420, %v414
    %v553 = vpack.c.b16 %v427, %v421
    %v554 = vpack.c.b16 %v428, %v422
    %v555 = vpack.c.b16 %v429, %v423
    %v556 = vpack.c.b16 %v430, %v424
    %v557 = vpack.c.b16 %v431, %v425
    %v558 = vpack.c.b16 %v432, %v426
    %v559 = vpack.c.b16 %v439, %v433
    %v560 = vpack.c.b16 %v440, %v434
    %v561 = vpack.c.b16 %v441, %v435
    %v562 = vpack.c.b16 %v442, %v436
    %v563 = vpack.c.b16 %v443, %v437
    %v564 = vpack.c.b16 %v444, %v438
    %v565 = vpack.c.b16 %v451, %v445
    %v566 = vpack.c.b16 %v452, %v446
    %v567 = vpack.c.b16 %v453, %v447
    %v568 = vpack.c.b16 %v454, %v448
    %v569 = vpack.c.b16 %v455, %v449
    %v570 = vpack.c.b16 %v456, %v450
    %v571 = vpack.c.b16 %v463, %v457
    %v572 = vpack.c.b16 %v464, %v458
    %v573 = vpack.c.b16 %v465, %v459
    %v574 = vpack.c.b16 %v466, %v460
    %v575 = vpack.c.b16 %v467, %v461
    %v576 = vpack.c.b16 %v468, %v462
    %v577 = vpack.c.b16 %v475, %v469
    %v578 = vpack.c.b16 %v476, %v470
    %v579 = vpack.c.b16 %v477, %v471
    %v580 = vpack.c.b16 %v478, %v472
    %v581 = vpack.c.b16 %v479, %v473
    %v582 = vpack.c.b16 %v480, %v474
    %v583 = vpack.c.b16 %v487, %v481
    %v584 = vpack.c.b16 %v488, %v482
    %v585 = vpack.c.b16 %v489, %v483
    %v586 = vpack.c.b16 %v490, %v484
    %v587 = vpack.c.b16 %v491, %v485
    %v588 = vpack.c.b16 %v492, %v486
    %685 = vmatpush.bf16.msra.mxu0 %v535
    %686 = vmatpush.bf16.msra.mxu0 %v529
    %687 = vmatpush.bf16.msra.mxu0 %v523
    %688 = vmatpush.bf16.msra.mxu0 %v517
    %689 = vmatpush.bf16.msra.mxu0 %v511
    %690 = vmatpush.bf16.msra.mxu0 %v505
    %691 = vmatpush.bf16.msra.mxu0 %v499
    %692 = vmatpush.bf16.msra.mxu0 %v493
    %693 = vmatmul.bf16.gmra.mxu0 %v93
    %v694 = vpop.f32.mrf.mxu0
    %v695 = vadd.f32 %v193, %v694
    %v696 = vpop.f32.mrf.mxu0
    %v697 = vadd.f32 %v193, %v696
    %698 = vdwg.mxu0
    %699 = vmatpush.bf16.msra.mxu0 %v583
    %700 = vmatpush.bf16.msra.mxu0 %v577
    %701 = vmatpush.bf16.msra.mxu0 %v571
    %702 = vmatpush.bf16.msra.mxu0 %v565
    %703 = vmatpush.bf16.msra.mxu0 %v559
    %704 = vmatpush.bf16.msra.mxu0 %v553
    %705 = vmatpush.bf16.msra.mxu0 %v547
    %706 = vmatpush.bf16.msra.mxu0 %v541
    %707 = vmatmul.bf16.gmra.mxu0 %v94
    %v708 = vpop.f32.mrf.mxu0
    %v709 = vadd.f32 %v695, %v708
    %v710 = vpop.f32.mrf.mxu0
    %v711 = vadd.f32 %v697, %v710
    %712 = vdwg.mxu0
    %713 = vmatpush.bf16.msra.mxu0 %v536
    %714 = vmatpush.bf16.msra.mxu0 %v530
    %715 = vmatpush.bf16.msra.mxu0 %v524
    %716 = vmatpush.bf16.msra.mxu0 %v518
    %717 = vmatpush.bf16.msra.mxu0 %v512
    %718 = vmatpush.bf16.msra.mxu0 %v506
    %719 = vmatpush.bf16.msra.mxu0 %v500
    %720 = vmatpush.bf16.msra.mxu0 %v494
    %721 = vmatmul.bf16.gmra.mxu0 %v93
    %v722 = vpop.f32.mrf.mxu0
    %v723 = vadd.f32 %v194, %v722
    %v724 = vpop.f32.mrf.mxu0
    %v725 = vadd.f32 %v194, %v724
    %726 = vdwg.mxu0
    %727 = vmatpush.bf16.msra.mxu0 %v584
    %728 = vmatpush.bf16.msra.mxu0 %v578
    %729 = vmatpush.bf16.msra.mxu0 %v572
    %730 = vmatpush.bf16.msra.mxu0 %v566
    %731 = vmatpush.bf16.msra.mxu0 %v560
    %732 = vmatpush.bf16.msra.mxu0 %v554
    %733 = vmatpush.bf16.msra.mxu0 %v548
    %734 = vmatpush.bf16.msra.mxu0 %v542
    %735 = vmatmul.bf16.gmra.mxu0 %v94
    %v736 = vpop.f32.mrf.mxu0
    %v737 = vadd.f32 %v723, %v736
    %v738 = vpop.f32.mrf.mxu0
    %v739 = vadd.f32 %v725, %v738
    %740 = vdwg.mxu0
    %741 = vmatpush.bf16.msra.mxu0 %v537
    %742 = vmatpush.bf16.msra.mxu0 %v531
    %743 = vmatpush.bf16.msra.mxu0 %v525
    %744 = vmatpush.bf16.msra.mxu0 %v519
    %745 = vmatpush.bf16.msra.mxu0 %v513
    %746 = vmatpush.bf16.msra.mxu0 %v507
    %747 = vmatpush.bf16.msra.mxu0 %v501
    %748 = vmatpush.bf16.msra.mxu0 %v495
    %749 = vmatmul.bf16.gmra.mxu0 %v93
    %v750 = vpop.f32.mrf.mxu0
    %v751 = vadd.f32 %v195, %v750
    %v752 = vpop.f32.mrf.mxu0
    %v753 = vadd.f32 %v195, %v752
    %754 = vdwg.mxu0
    %755 = vmatpush.bf16.msra.mxu0 %v585
    %756 = vmatpush.bf16.msra.mxu0 %v579
    %757 = vmatpush.bf16.msra.mxu0 %v573
    %758 = vmatpush.bf16.msra.mxu0 %v567
    %759 = vmatpush.bf16.msra.mxu0 %v561
    %760 = vmatpush.bf16.msra.mxu0 %v555
    %761 = vmatpush.bf16.msra.mxu0 %v549
    %762 = vmatpush.bf16.msra.mxu0 %v543
    %763 = vmatmul.bf16.gmra.mxu0 %v94
    %v764 = vpop.f32.mrf.mxu0
    %v765 = vadd.f32 %v751, %v764
    %v766 = vpop.f32.mrf.mxu0
    %v767 = vadd.f32 %v753, %v766
    %768 = vdwg.mxu0
    %769 = vmatpush.bf16.msra.mxu0 %v538
    %770 = vmatpush.bf16.msra.mxu0 %v532
    %771 = vmatpush.bf16.msra.mxu0 %v526
    %772 = vmatpush.bf16.msra.mxu0 %v520
    %773 = vmatpush.bf16.msra.mxu0 %v514
    %774 = vmatpush.bf16.msra.mxu0 %v508
    %775 = vmatpush.bf16.msra.mxu0 %v502
    %776 = vmatpush.bf16.msra.mxu0 %v496
    %777 = vmatmul.bf16.gmra.mxu0 %v93
    %v778 = vpop.f32.mrf.mxu0
    %v779 = vadd.f32 %v196, %v778
    %v780 = vpop.f32.mrf.mxu0
    %v781 = vadd.f32 %v196, %v780
    %782 = vdwg.mxu0
    %783 = vmatpush.bf16.msra.mxu0 %v586
    %784 = vmatpush.bf16.msra.mxu0 %v580
    %785 = vmatpush.bf16.msra.mxu0 %v574
    %786 = vmatpush.bf16.msra.mxu0 %v568
    %787 = vmatpush.bf16.msra.mxu0 %v562
    %788 = vmatpush.bf16.msra.mxu0 %v556
    %789 = vmatpush.bf16.msra.mxu0 %v550
    %790 = vmatpush.bf16.msra.mxu0 %v544
    %791 = vmatmul.bf16.gmra.mxu0 %v94
    %v792 = vpop.f32.mrf.mxu0
    %v793 = vadd.f32 %v779, %v792
    %v794 = vpop.f32.mrf.mxu0
    %v795 = vadd.f32 %v781, %v794
    %796 = vdwg.mxu0
    %797 = vmatpush.bf16.msra.mxu0 %v539
    %798 = vmatpush.bf16.msra.mxu0 %v533
    %799 = vmatpush.bf16.msra.mxu0 %v527
    %800 = vmatpush.bf16.msra.mxu0 %v521
    %801 = vmatpush.bf16.msra.mxu0 %v515
    %802 = vmatpush.bf16.msra.mxu0 %v509
    %803 = vmatpush.bf16.msra.mxu0 %v503
    %804 = vmatpush.bf16.msra.mxu0 %v497
    %805 = vmatmul.bf16.gmra.mxu0 %v93
    %v806 = vpop.f32.mrf.mxu0
    %v807 = vadd.f32 %v197, %v806
    %v808 = vpop.f32.mrf.mxu0
    %v809 = vadd.f32 %v197, %v808
    %810 = vdwg.mxu0
    %811 = vmatpush.bf16.msra.mxu0 %v587
    %812 = vmatpush.bf16.msra.mxu0 %v581
    %813 = vmatpush.bf16.msra.mxu0 %v575
    %814 = vmatpush.bf16.msra.mxu0 %v569
    %815 = vmatpush.bf16.msra.mxu0 %v563
    %816 = vmatpush.bf16.msra.mxu0 %v557
    %817 = vmatpush.bf16.msra.mxu0 %v551
    %818 = vmatpush.bf16.msra.mxu0 %v545
    %819 = vmatmul.bf16.gmra.mxu0 %v94
    %v820 = vpop.f32.mrf.mxu0
    %v821 = vadd.f32 %v807, %v820
    %v822 = vpop.f32.mrf.mxu0
    %v823 = vadd.f32 %v809, %v822
    %824 = vdwg.mxu0
    %825 = vmatpush.bf16.msra.mxu0 %v540
    %826 = vmatpush.bf16.msra.mxu0 %v534
    %827 = vmatpush.bf16.msra.mxu0 %v528
    %828 = vmatpush.bf16.msra.mxu0 %v522
    %829 = vmatpush.bf16.msra.mxu0 %v516
    %830 = vmatpush.bf16.msra.mxu0 %v510
    %831 = vmatpush.bf16.msra.mxu0 %v504
    %832 = vmatpush.bf16.msra.mxu0 %v498
    %833 = vmatmul.bf16.gmra.mxu0 %v93
    %v834 = vpop.f32.mrf.mxu0
    %v835 = vadd.f32 %v198, %v834
    %v836 = vpop.f32.mrf.mxu0
    %v837 = vadd.f32 %v198, %v836
    %838 = vdwg.mxu0
    %839 = vmatpush.bf16.msra.mxu0 %v588
    %840 = vmatpush.bf16.msra.mxu0 %v582
    %841 = vmatpush.bf16.msra.mxu0 %v576
    %842 = vmatpush.bf16.msra.mxu0 %v570
    %843 = vmatpush.bf16.msra.mxu0 %v564
    %844 = vmatpush.bf16.msra.mxu0 %v558
    %845 = vmatpush.bf16.msra.mxu0 %v552
    %846 = vmatpush.bf16.msra.mxu0 %v546
    %847 = vmatmul.bf16.gmra.mxu0 %v94
    %v848 = vpop.f32.mrf.mxu0
    %v849 = vadd.f32 %v835, %v848
    %v850 = vpop.f32.mrf.mxu0
    %v851 = vadd.f32 %v837, %v850
    %852 = vdwg.mxu0
    %v853 = vmax.f32 %v709, 0.0
    %v854 = vmax.f32 %v737, 0.0
    %v855 = vmax.f32 %v765, 0.0
    %v856 = vmax.f32 %v793, 0.0
    %v857 = vmax.f32 %v821, 0.0
    %v858 = vmax.f32 %v849, 0.0
    %v859 = vmax.f32 %v711, 0.0
    %v860 = vmax.f32 %v739, 0.0
    %v861 = vmax.f32 %v767, 0.0
    %v862 = vmax.f32 %v795, 0.0
    %v863 = vmax.f32 %v823, 0.0
    %v864 = vmax.f32 %v851, 0.0
    %v865 = vpack.c.bf16 %v859, %v853
    %v866 = vpack.c.bf16 %v860, %v854
    %v867 = vpack.c.bf16 %v861, %v855
    %v868 = vpack.c.bf16 %v862, %v856
    %v869 = vpack.c.bf16 %v863, %v857
    %v870 = vpack.c.bf16 %v864, %v858
    %v871 = vld [vmem:[#allocation8] sm:$0xf]
    %v872 = vld [vmem:[#allocation8 + $0x4] sm:$0xf]
    %v873 = vld [vmem:[#allocation8 + $0x8] sm:$0xf]
    %v874 = vld [vmem:[#allocation8 + $0xc] sm:$0xf]
    %v875 = vld [vmem:[#allocation8 + $0x10] sm:$0xf]
    %v876 = vld [vmem:[#allocation8 + $0x14] sm:$0xf]
    %v877 = vld [vmem:[#allocation8 + $0x18] sm:$0xf]
    %v878 = vld [vmem:[#allocation8 + $0x1c] sm:$0xf]
    %v879 = vld [vmem:[#allocation8 + $0x20] sm:$0xf]
    %v880 = vld [vmem:[#allocation8 + $0x24] sm:$0xf]
    %v881 = vld [vmem:[#allocation8 + $0x28] sm:$0xf]
    %v882 = vld [vmem:[#allocation8 + $0x2c] sm:$0xf]
    %v883 = vld [vmem:[#allocation8 + $0x30] sm:$0xf]
    %v884 = vld [vmem:[#allocation8 + $0x34] sm:$0xf]
    %v885 = vld [vmem:[#allocation8 + $0x38] sm:$0xf]
    %v886 = vld [vmem:[#allocation8 + $0x3c] sm:$0xf]
    %v887 = vld [vmem:[#allocation8 + $0x40] sm:$0xf]
    %v888 = vld [vmem:[#allocation8 + $0x44] sm:$0xf]
    %v889 = vld [vmem:[#allocation8 + $0x48] sm:$0xf]
    %v890 = vld [vmem:[#allocation8 + $0x4c] sm:$0xf]
    %v891 = vld [vmem:[#allocation8 + $0x50] sm:$0xf]
    %v892 = vld [vmem:[#allocation8 + $0x54] sm:$0xf]
    %v893 = vld [vmem:[#allocation8 + $0x58] sm:$0xf]
    %v894 = vld [vmem:[#allocation8 + $0x5c] sm:$0xf]
    %v895 = vld [vmem:[#allocation8 + $0x60] sm:$0xf]
    %v896 = vld [vmem:[#allocation8 + $0x64] sm:$0xf]
    %v897 = vld [vmem:[#allocation8 + $0x68] sm:$0xf]
    %v898 = vld [vmem:[#allocation8 + $0x6c] sm:$0xf]
    %v899 = vld [vmem:[#allocation8 + $0x70] sm:$0xf]
    %v900 = vld [vmem:[#allocation8 + $0x74] sm:$0xf]
    %v901 = vld [vmem:[#allocation8 + $0x78] sm:$0xf]
    %v902 = vld [vmem:[#allocation8 + $0x7c] sm:$0xf]
    %v903 = vld [vmem:[#allocation8 + $0x80] sm:$0xf]
    %v904 = vld [vmem:[#allocation8 + $0x84] sm:$0xf]
    %v905 = vld [vmem:[#allocation8 + $0x88] sm:$0xf]
    %v906 = vld [vmem:[#allocation8 + $0x8c] sm:$0xf]
    %v907 = vld [vmem:[#allocation8 + $0x90] sm:$0xf]
    %v908 = vld [vmem:[#allocation8 + $0x94] sm:$0xf]
    %v909 = vld [vmem:[#allocation8 + $0x98] sm:$0xf]
    %v910 = vld [vmem:[#allocation8 + $0x9c] sm:$0xf]
    %v911 = vld [vmem:[#allocation8 + $0xa0] sm:$0xf]
    %v912 = vld [vmem:[#allocation8 + $0xa4] sm:$0xf]
    %v913 = vld [vmem:[#allocation8 + $0xa8] sm:$0xf]
    %v914 = vld [vmem:[#allocation8 + $0xac] sm:$0xf]
    %v915 = vld [vmem:[#allocation8 + $0xb0] sm:$0xf]
    %v916 = vld [vmem:[#allocation8 + $0xb4] sm:$0xf]
    %v917 = vld [vmem:[#allocation8 + $0xb8] sm:$0xf]
    %v918 = vld [vmem:[#allocation8 + $0xbc] sm:$0xf]
    %v919 = vld [vmem:[#allocation8 + $0xc0] sm:$0xf]
    %v920 = vld [vmem:[#allocation8 + $0xc4] sm:$0xf]
    %v921 = vld [vmem:[#allocation8 + $0xc8] sm:$0xf]
    %v922 = vld [vmem:[#allocation8 + $0xcc] sm:$0xf]
    %v923 = vld [vmem:[#allocation8 + $0xd0] sm:$0xf]
    %v924 = vld [vmem:[#allocation8 + $0xd4] sm:$0xf]
    %v925 = vld [vmem:[#allocation8 + $0xd8] sm:$0xf]
    %v926 = vld [vmem:[#allocation8 + $0xdc] sm:$0xf]
    %v927 = vld [vmem:[#allocation8 + $0xe0] sm:$0xf]
    %v928 = vld [vmem:[#allocation8 + $0xe4] sm:$0xf]
    %v929 = vld [vmem:[#allocation8 + $0xe8] sm:$0xf]
    %v930 = vld [vmem:[#allocation8 + $0xec] sm:$0xf]
    %v931 = vld [vmem:[#allocation8 + $0xf0] sm:$0xf]
    %v932 = vld [vmem:[#allocation8 + $0xf4] sm:$0xf]
    %v933 = vld [vmem:[#allocation8 + $0xf8] sm:$0xf]
    %v934 = vld [vmem:[#allocation8 + $0xfc] sm:$0xf]
    %v935 = vld [vmem:[#allocation8 + $0x100] sm:$0xf]
    %v936 = vld [vmem:[#allocation8 + $0x104] sm:$0xf]
    %v937 = vld [vmem:[#allocation8 + $0x108] sm:$0xf]
    %v938 = vld [vmem:[#allocation8 + $0x10c] sm:$0xf]
    %v939 = vld [vmem:[#allocation8 + $0x110] sm:$0xf]
    %v940 = vld [vmem:[#allocation8 + $0x114] sm:$0xf]
    %v941 = vld [vmem:[#allocation8 + $0x118] sm:$0xf]
    %v942 = vld [vmem:[#allocation8 + $0x11c] sm:$0xf]
    %v943 = vld [vmem:[#allocation8 + $0x120] sm:$0xf]
    %v944 = vld [vmem:[#allocation8 + $0x124] sm:$0xf]
    %v945 = vld [vmem:[#allocation8 + $0x128] sm:$0xf]
    %v946 = vld [vmem:[#allocation8 + $0x12c] sm:$0xf]
    %v947 = vld [vmem:[#allocation8 + $0x130] sm:$0xf]
    %v948 = vld [vmem:[#allocation8 + $0x134] sm:$0xf]
    %v949 = vld [vmem:[#allocation8 + $0x138] sm:$0xf]
    %v950 = vld [vmem:[#allocation8 + $0x13c] sm:$0xf]
    %v951 = vld [vmem:[#allocation8 + $0x140] sm:$0xf]
    %v952 = vld [vmem:[#allocation8 + $0x144] sm:$0xf]
    %v953 = vld [vmem:[#allocation8 + $0x148] sm:$0xf]
    %v954 = vld [vmem:[#allocation8 + $0x14c] sm:$0xf]
    %v955 = vld [vmem:[#allocation8 + $0x150] sm:$0xf]
    %v956 = vld [vmem:[#allocation8 + $0x154] sm:$0xf]
    %v957 = vld [vmem:[#allocation8 + $0x158] sm:$0xf]
    %v958 = vld [vmem:[#allocation8 + $0x15c] sm:$0xf]
    %v959 = vld [vmem:[#allocation8 + $0x160] sm:$0xf]
    %v960 = vld [vmem:[#allocation8 + $0x164] sm:$0xf]
    %v961 = vld [vmem:[#allocation8 + $0x168] sm:$0xf]
    %v962 = vld [vmem:[#allocation8 + $0x16c] sm:$0xf]
    %v963 = vld [vmem:[#allocation8 + $0x170] sm:$0xf]
    %v964 = vld [vmem:[#allocation8 + $0x174] sm:$0xf]
    %v965 = vld [vmem:[#allocation8 + $0x178] sm:$0xf]
    %v966 = vld [vmem:[#allocation8 + $0x17c] sm:$0xf]
    %v967 = vld [vmem:[%s4] sm:$0x1]
    %v969 = vperm.slane %v967, 0
    %v1067 = vunpack.c.l.b16 %v871
    %v1068 = vunpack.c.l.b16 %v872
    %v1069 = vunpack.c.l.b16 %v873
    %v1070 = vunpack.c.l.b16 %v874
    %v1071 = vunpack.c.l.b16 %v875
    %v1072 = vunpack.c.l.b16 %v876
    %v1073 = vunpack.c.l.b16 %v877
    %v1074 = vunpack.c.l.b16 %v878
    %v1075 = vunpack.c.l.b16 %v879
    %v1076 = vunpack.c.l.b16 %v880
    %v1077 = vunpack.c.l.b16 %v881
    %v1078 = vunpack.c.l.b16 %v882
    %v1079 = vunpack.c.l.b16 %v883
    %v1080 = vunpack.c.l.b16 %v884
    %v1081 = vunpack.c.l.b16 %v885
    %v1082 = vunpack.c.l.b16 %v886
    %v1083 = vunpack.c.l.b16 %v887
    %v1084 = vunpack.c.l.b16 %v888
    %v1085 = vunpack.c.l.b16 %v889
    %v1086 = vunpack.c.l.b16 %v890
    %v1087 = vunpack.c.l.b16 %v891
    %v1088 = vunpack.c.l.b16 %v892
    %v1089 = vunpack.c.l.b16 %v893
    %v1090 = vunpack.c.l.b16 %v894
    %v1091 = vunpack.c.l.b16 %v895
    %v1092 = vunpack.c.l.b16 %v896
    %v1093 = vunpack.c.l.b16 %v897
    %v1094 = vunpack.c.l.b16 %v898
    %v1095 = vunpack.c.l.b16 %v899
    %v1096 = vunpack.c.l.b16 %v900
    %v1097 = vunpack.c.l.b16 %v901
    %v1098 = vunpack.c.l.b16 %v902
    %v1099 = vunpack.c.l.b16 %v903
    %v1100 = vunpack.c.l.b16 %v904
    %v1101 = vunpack.c.l.b16 %v905
    %v1102 = vunpack.c.l.b16 %v906
    %v1103 = vunpack.c.l.b16 %v907
    %v1104 = vunpack.c.l.b16 %v908
    %v1105 = vunpack.c.l.b16 %v909
    %v1106 = vunpack.c.l.b16 %v910
    %v1107 = vunpack.c.l.b16 %v911
    %v1108 = vunpack.c.l.b16 %v912
    %v1109 = vunpack.c.l.b16 %v913
    %v1110 = vunpack.c.l.b16 %v914
    %v1111 = vunpack.c.l.b16 %v915
    %v1112 = vunpack.c.l.b16 %v916
    %v1113 = vunpack.c.l.b16 %v917
    %v1114 = vunpack.c.l.b16 %v918
    %v1115 = vunpack.c.l.b16 %v919
    %v1116 = vunpack.c.l.b16 %v920
    %v1117 = vunpack.c.l.b16 %v921
    %v1118 = vunpack.c.l.b16 %v922
    %v1119 = vunpack.c.l.b16 %v923
    %v1120 = vunpack.c.l.b16 %v924
    %v1121 = vunpack.c.l.b16 %v925
    %v1122 = vunpack.c.l.b16 %v926
    %v1123 = vunpack.c.l.b16 %v927
    %v1124 = vunpack.c.l.b16 %v928
    %v1125 = vunpack.c.l.b16 %v929
    %v1126 = vunpack.c.l.b16 %v930
    %v1127 = vunpack.c.l.b16 %v931
    %v1128 = vunpack.c.l.b16 %v932
    %v1129 = vunpack.c.l.b16 %v933
    %v1130 = vunpack.c.l.b16 %v934
    %v1131 = vunpack.c.l.b16 %v935
    %v1132 = vunpack.c.l.b16 %v936
    %v1133 = vunpack.c.l.b16 %v937
    %v1134 = vunpack.c.l.b16 %v938
    %v1135 = vunpack.c.l.b16 %v939
    %v1136 = vunpack.c.l.b16 %v940
    %v1137 = vunpack.c.l.b16 %v941
    %v1138 = vunpack.c.l.b16 %v942
    %v1139 = vunpack.c.l.b16 %v943
    %v1140 = vunpack.c.l.b16 %v944
    %v1141 = vunpack.c.l.b16 %v945
    %v1142 = vunpack.c.l.b16 %v946
    %v1143 = vunpack.c.l.b16 %v947
    %v1144 = vunpack.c.l.b16 %v948
    %v1145 = vunpack.c.l.b16 %v949
    %v1146 = vunpack.c.l.b16 %v950
    %v1147 = vunpack.c.l.b16 %v951
    %v1148 = vunpack.c.l.b16 %v952
    %v1149 = vunpack.c.l.b16 %v953
    %v1150 = vunpack.c.l.b16 %v954
    %v1151 = vunpack.c.l.b16 %v955
    %v1152 = vunpack.c.l.b16 %v956
    %v1153 = vunpack.c.l.b16 %v957
    %v1154 = vunpack.c.l.b16 %v958
    %v1155 = vunpack.c.l.b16 %v959
    %v1156 = vunpack.c.l.b16 %v960
    %v1157 = vunpack.c.l.b16 %v961
    %v1158 = vunpack.c.l.b16 %v962
    %v1159 = vunpack.c.l.b16 %v963
    %v1160 = vunpack.c.l.b16 %v964
    %v1161 = vunpack.c.l.b16 %v965
    %v1162 = vunpack.c.l.b16 %v966
    %v1163 = vpack.c.b16 %v1068, %v1067
    %v1164 = vpack.c.b16 %v1070, %v1069
    %v1165 = vpack.c.b16 %v1072, %v1071
    %v1166 = vpack.c.b16 %v1074, %v1073
    %v1167 = vpack.c.b16 %v1076, %v1075
    %v1168 = vpack.c.b16 %v1078, %v1077
    %v1169 = vpack.c.b16 %v1080, %v1079
    %v1170 = vpack.c.b16 %v1082, %v1081
    %v1171 = vpack.c.b16 %v1084, %v1083
    %v1172 = vpack.c.b16 %v1086, %v1085
    %v1173 = vpack.c.b16 %v1088, %v1087
    %v1174 = vpack.c.b16 %v1090, %v1089
    %v1175 = vpack.c.b16 %v1092, %v1091
    %v1176 = vpack.c.b16 %v1094, %v1093
    %v1177 = vpack.c.b16 %v1096, %v1095
    %v1178 = vpack.c.b16 %v1098, %v1097
    %v1179 = vpack.c.b16 %v1100, %v1099
    %v1180 = vpack.c.b16 %v1102, %v1101
    %v1181 = vpack.c.b16 %v1104, %v1103
    %v1182 = vpack.c.b16 %v1106, %v1105
    %v1183 = vpack.c.b16 %v1108, %v1107
    %v1184 = vpack.c.b16 %v1110, %v1109
    %v1185 = vpack.c.b16 %v1112, %v1111
    %v1186 = vpack.c.b16 %v1114, %v1113
    %v1187 = vpack.c.b16 %v1116, %v1115
    %v1188 = vpack.c.b16 %v1118, %v1117
    %v1189 = vpack.c.b16 %v1120, %v1119
    %v1190 = vpack.c.b16 %v1122, %v1121
    %v1191 = vpack.c.b16 %v1124, %v1123
    %v1192 = vpack.c.b16 %v1126, %v1125
    %v1193 = vpack.c.b16 %v1128, %v1127
    %v1194 = vpack.c.b16 %v1130, %v1129
    %v1195 = vpack.c.b16 %v1132, %v1131
    %v1196 = vpack.c.b16 %v1134, %v1133
    %v1197 = vpack.c.b16 %v1136, %v1135
    %v1198 = vpack.c.b16 %v1138, %v1137
    %v1199 = vpack.c.b16 %v1140, %v1139
    %v1200 = vpack.c.b16 %v1142, %v1141
    %v1201 = vpack.c.b16 %v1144, %v1143
    %v1202 = vpack.c.b16 %v1146, %v1145
    %v1203 = vpack.c.b16 %v1148, %v1147
    %v1204 = vpack.c.b16 %v1150, %v1149
    %v1205 = vpack.c.b16 %v1152, %v1151
    %v1206 = vpack.c.b16 %v1154, %v1153
    %v1207 = vpack.c.b16 %v1156, %v1155
    %v1208 = vpack.c.b16 %v1158, %v1157
    %v1209 = vpack.c.b16 %v1160, %v1159
    %v1210 = vpack.c.b16 %v1162, %v1161
    %1259 = vmatpush.bf16.msra.mxu0 %v1170
    %1260 = vmatpush.bf16.msra.mxu0 %v1169
    %1261 = vmatpush.bf16.msra.mxu0 %v1168
    %1262 = vmatpush.bf16.msra.mxu0 %v1167
    %1263 = vmatpush.bf16.msra.mxu0 %v1166
    %1264 = vmatpush.bf16.msra.mxu0 %v1165
    %1265 = vmatpush.bf16.msra.mxu0 %v1164
    %1266 = vmatpush.bf16.msra.mxu0 %v1163
    %1267 = vmatmul.bf16.gmra.mxu0 %v865
    %v1268 = vpop.f32.mrf.mxu0
    %v1269 = vadd.f32 %v969, %v1268
    %v1270 = vpop.f32.mrf.mxu0
    %v1271 = vadd.f32 %v969, %v1270
    %1272 = vdwg.mxu0
    %1273 = vmatpush.bf16.msra.mxu0 %v1178
    %1274 = vmatpush.bf16.msra.mxu0 %v1177
    %1275 = vmatpush.bf16.msra.mxu0 %v1176
    %1276 = vmatpush.bf16.msra.mxu0 %v1175
    %1277 = vmatpush.bf16.msra.mxu0 %v1174
    %1278 = vmatpush.bf16.msra.mxu0 %v1173
    %1279 = vmatpush.bf16.msra.mxu0 %v1172
    %1280 = vmatpush.bf16.msra.mxu0 %v1171
    %1281 = vmatmul.bf16.gmra.mxu0 %v866
    %v1282 = vpop.f32.mrf.mxu0
    %v1283 = vadd.f32 %v1269, %v1282
    %v1284 = vpop.f32.mrf.mxu0
    %v1285 = vadd.f32 %v1271, %v1284
    %1286 = vdwg.mxu0
    %1287 = vmatpush.bf16.msra.mxu0 %v1186
    %1288 = vmatpush.bf16.msra.mxu0 %v1185
    %1289 = vmatpush.bf16.msra.mxu0 %v1184
    %1290 = vmatpush.bf16.msra.mxu0 %v1183
    %1291 = vmatpush.bf16.msra.mxu0 %v1182
    %1292 = vmatpush.bf16.msra.mxu0 %v1181
    %1293 = vmatpush.bf16.msra.mxu0 %v1180
    %1294 = vmatpush.bf16.msra.mxu0 %v1179
    %1295 = vmatmul.bf16.gmra.mxu0 %v867
    %v1296 = vpop.f32.mrf.mxu0
    %v1297 = vadd.f32 %v1283, %v1296
    %v1298 = vpop.f32.mrf.mxu0
    %v1299 = vadd.f32 %v1285, %v1298
    %1300 = vdwg.mxu0
    %1301 = vmatpush.bf16.msra.mxu0 %v1194
    %1302 = vmatpush.bf16.msra.mxu0 %v1193
    %1303 = vmatpush.bf16.msra.mxu0 %v1192
    %1304 = vmatpush.bf16.msra.mxu0 %v1191
    %1305 = vmatpush.bf16.msra.mxu0 %v1190
    %1306 = vmatpush.bf16.msra.mxu0 %v1189
    %1307 = vmatpush.bf16.msra.mxu0 %v1188
    %1308 = vmatpush.bf16.msra.mxu0 %v1187
    %1309 = vmatmul.bf16.gmra.mxu0 %v868
    %v1310 = vpop.f32.mrf.mxu0
    %v1311 = vadd.f32 %v1297, %v1310
    %v1312 = vpop.f32.mrf.mxu0
    %v1313 = vadd.f32 %v1299, %v1312
    %1314 = vdwg.mxu0
    %1315 = vmatpush.bf16.msra.mxu0 %v1202
    %1316 = vmatpush.bf16.msra.mxu0 %v1201
    %1317 = vmatpush.bf16.msra.mxu0 %v1200
    %1318 = vmatpush.bf16.msra.mxu0 %v1199
    %1319 = vmatpush.bf16.msra.mxu0 %v1198
    %1320 = vmatpush.bf16.msra.mxu0 %v1197
    %1321 = vmatpush.bf16.msra.mxu0 %v1196
    %1322 = vmatpush.bf16.msra.mxu0 %v1195
    %1323 = vmatmul.bf16.gmra.mxu0 %v869
    %v1324 = vpop.f32.mrf.mxu0
    %v1325 = vadd.f32 %v1311, %v1324
    %v1326 = vpop.f32.mrf.mxu0
    %v1327 = vadd.f32 %v1313, %v1326
    %1328 = vdwg.mxu0
    %1329 = vmatpush.bf16.msra.mxu0 %v1210
    %1330 = vmatpush.bf16.msra.mxu0 %v1209
    %1331 = vmatpush.bf16.msra.mxu0 %v1208
    %1332 = vmatpush.bf16.msra.mxu0 %v1207
    %1333 = vmatpush.bf16.msra.mxu0 %v1206
    %1334 = vmatpush.bf16.msra.mxu0 %v1205
    %1335 = vmatpush.bf16.msra.mxu0 %v1204
    %1336 = vmatpush.bf16.msra.mxu0 %v1203
    %1337 = vmatmul.bf16.gmra.mxu0 %v870
    %v1338 = vpop.f32.mrf.mxu0
    %v1339 = vadd.f32 %v1325, %v1338
    %v1340 = vpop.f32.mrf.mxu0
    %v1341 = vadd.f32 %v1327, %v1340
    %1342 = vdwg.mxu0
    %v1343 = vmax.f32 %v1339, 0.0
    %v1344 = vmax.f32 %v1341, 0.0
    %v1345 = vld [vmem:[%s5] sm:$0x1]
    %v1347 = vperm.slane %v1345, 0
    %v1349 = vmul.f32 %v1343, %v1347
    %v1350 = vmul.f32 %v1344, %v1347
    %1351 = vadd.xlane.f32.xlu0 %v1349
    %v1352 = vpop.xlane.xlu0 %1351
    %1353 = vadd.xlane.f32.xlu0 %v1350
    %v1354 = vpop.xlane.xlu0 %1353
    %v1355 = vld [vmem:[#allocation2] sm:$0x1]
    %v1357 = vperm.slane %v1355, 0
    %v1359 = vadd.f32 %v1352, %v1357
    %v1360 = vadd.f32 %v1354, %v1357
    %v1361 = vxor.u32 %v1359, 2147483648
    %v1362 = vxor.u32 %v1360, 2147483648
    %v1363 = vmul.f32 %v1361, 1.442695
    %v1364 = vpow.pop %v1363
    %v1365 = vmul.f32 %v1362, 1.442695
    %v1366 = vpow.pop %v1365
    %v1367 = vadd.f32 %v1364, 1.0
    %v1368 = vadd.f32 %v1366, 1.0
    %v1369 = vrcp.pop %v1367
    %v1370 = vmul.f32 %v1367, %v1369
    %v1371 = vsub.f32 1.0, %v1370
    %v1372 = vmul.f32 %v1369, %v1371
    %v1373 = vadd.f32 %v1369, %v1372
    %vm1374 = vweird.f32 %v1367
    %vm1375 = vweird.f32 %v1369
    %vm1376 = vmor %vm1374, %vm1375
    %v1377 = vsel %vm1376, %v1369, %v1373
    %v1378 = vand.u32 2147483647, %v1367
    %vm1379 = vcmp.eq.f32.partialorder %v1378, 8.507059e+37
    %v1380 = vand.u32 %v1367, 2147483648
    %v1381 = vor.u32 1.1754944e-38, %v1380
    %v1382 = vsel %vm1379, %v1381, %v1377
    %v1383 = vmul.f32 1.0, %v1382
    %v1384 = vrcp.pop %v1368
    %v1385 = vmul.f32 %v1368, %v1384
    %v1386 = vsub.f32 1.0, %v1385
    %v1387 = vmul.f32 %v1384, %v1386
    %v1388 = vadd.f32 %v1384, %v1387
    %vm1389 = vweird.f32 %v1368
    %vm1390 = vweird.f32 %v1384
    %vm1391 = vmor %vm1389, %vm1390
    %v1392 = vsel %vm1391, %v1384, %v1388
    %v1393 = vand.u32 2147483647, %v1368
    %vm1394 = vcmp.eq.f32.partialorder %v1393, 8.507059e+37
    %v1395 = vand.u32 %v1368, 2147483648
    %v1396 = vor.u32 1.1754944e-38, %v1395
    %v1397 = vsel %vm1394, %v1396, %v1392
    %v1398 = vmul.f32 1.0, %v1397
    %vm1399 = vcmask 7168
    %1400 = vst.msk [vmem:[%s7] sm:$0xff] %vm1399, %v1383
    %1401 = vst.msk [vmem:[%s7 + $0x8] sm:$0xff] %vm1399, %v1398
    // Predicated region
    $region46: #{tpu_custom_call.1} parent=1 // pred_check
      _
    $region47: #{tpu_custom_call.1} parent=1 // pred_check_branch
      %1403 = sbr.rel (0) target = $region49
    $region48: #{tpu_custom_call.1} parent=1 // pred_region
      _
    $region49: #{tpu_custom_call.1} parent=1 // pred_fallthru
      _
    // Predicated region
    $region50: #{tpu_custom_call.1} parent=1 // pred_check
      _
    $region51: #{tpu_custom_call.1} parent=1 // pred_check_branch
      %1405 = sbr.rel (0) target = $region53
    $region52: #{tpu_custom_call.1} parent=1 // pred_region
      _
    $region53: #{tpu_custom_call.1} parent=1 // pred_fallthru
      _
    %1406 = vsyncpa [#allocation4], 1
    %1407 = vsyncpa [#allocation6], 1
    %1408 = vsyncpa [#allocation9], 1

</llo_original>
